<compile_context>
chip_gen: v6e
topology: v6e:2x2x1
jax: 0.10.0
libtpu: 0.0.40
codegen_flags: <defaults>
</compile_context>

<pallas_src>
import functools

import numpy as np
import jax
import jax.numpy as jnp
from jax.experimental import pallas as pl
from jax.experimental.pallas import tpu as pltpu


# --------------------------- hardware-aware sizing -------------------------- #

def _vmem_budget_bytes():
    """Usable per-core VMEM: physical capacity minus headroom for Mosaic."""
    cap = 128 * 2**20
    try:
        info = pltpu.get_tpu_info()
        cap = int(getattr(info, "vmem_capacity_bytes", cap) or cap)
    except Exception:
        pass
    return max(cap - (8 << 20), 16 << 20)


def _pick_channel_tile(C, HW, budget_bytes):
    """Largest channel tile (divides C; multiple of 128 unless == C) whose
    double-buffered f32 x block fits the budget."""
    cands = sorted({t for t in (C, 4096, 2048, 1024, 512, 256, 128)
                    if t <= C and C % t == 0}, reverse=True)
    for t in cands:
        if 2 * t * HW * 4 <= budget_bytes:
            return t
    return cands[-1]


def _pick_hw_tile(HWp, nR, SSp, budget_bytes):
    """Largest HW tile (divides HWp; multiple of 128) whose f32 output block
    plus bf16 U-slice (both double-buffered) fit the budget."""
    if HWp % 128 != 0:
        return HWp
    cands = sorted({t for t in (HWp, 4096, 2048, 1024, 512, 256, 128)
                    if t <= HWp and HWp % t == 0 and t % 128 == 0}, reverse=True)
    for t in cands:
        if 2 * t * (nR * 4 + SSp * 2) <= budget_bytes:
            return t
    return cands[-1]


# ----------------- kernel 1: adaptive pool + 1x1 conv + ReLU ---------------- #

def _pool_conv_kernel(x_ref, pallT_ref, w_ref, mask_ref, y_ref, acc_ref):
    # x_ref    : (1, TC, HW)  f32   one batch element, one channel tile (NCHW)
    # pallT_ref: (HW, SSp)    bf16  stacked adaptive-avg-pool matrices (transposed)
    # w_ref    : (nR, TC)     bf16  concatenated 1x1-conv weights (channel tile)
    # mask_ref : (nR, SSp)    f32   block-diagonal branch mask (finalize only)
    # y_ref    : (1, nR, SSp) bf16  relu(conv(pool(x))) for all branches
    # acc_ref  : (nR, SSp)    f32   scratch accumulator over channel tiles
    c = pl.program_id(1)

    @pl.when(c == 0)
    def _init():
        acc_ref[...] = jnp.zeros_like(acc_ref)

    # Stage 1: adaptive avg-pool of this channel tile for every branch at once.
    xb = x_ref[0].astype(jnp.bfloat16)                              # (TC, HW)
    pooled_t = jnp.dot(xb, pallT_ref[...],
                       preferred_element_type=jnp.float32)          # (TC, SSp)

    # Stage 2: partial 1x1 conv (contraction over this channel tile), all
    # branches at once; cross-branch terms are removed by the mask at finalize.
    acc_ref[...] += jnp.dot(w_ref[...], pooled_t.astype(jnp.bfloat16),
                            preferred_element_type=jnp.float32)     # (nR, SSp)

    @pl.when(c == pl.num_programs(1) - 1)
    def _finalize():
        y = jnp.maximum(acc_ref[...] * mask_ref[...], 0.0)
        y_ref[0] = y.astype(y_ref.dtype)


def _pool_conv(x_flat, pallT, w_all, mask):
    """x_flat: (B, C, HW) f32  ->  (B, nR, SSp) bf16 (pool + conv + relu)."""
    B, C, HW = x_flat.shape
    SSp = pallT.shape[1]
    nR = w_all.shape[0]

    budget = _vmem_budget_bytes()
    TC = _pick_channel_tile(C, HW, int(0.35 * budget))
    nc = C // TC

    need = (2 * TC * HW * 4        # x block (f32, double buffered)
            + 2 * HW * SSp * 2     # P_all^T (bf16)
            + 2 * nR * TC * 2      # conv-weight tile (bf16)
            + 2 * nR * SSp * 4     # mask (f32)
            + 2 * nR * SSp * 2     # output block (bf16)
            + nR * SSp * 4)        # f32 accumulator scratch
    vmem_limit = int(min(budget, max(need + (8 << 20), 32 << 20)))

    return pl.pallas_call(
        _pool_conv_kernel,
        out_shape=jax.ShapeDtypeStruct((B, nR, SSp), jnp.bfloat16),
        grid_spec=pltpu.PrefetchScalarGridSpec(
            num_scalar_prefetch=0,
            grid=(B, nc),
            in_specs=[
                pl.BlockSpec((1, TC, HW), lambda b, c: (b, c, 0)),
                pl.BlockSpec((HW, SSp), lambda b, c: (0, 0)),
                # Full-C tile (the common case on 128 MiB parts) keeps the
                # weights resident (block index constant); when C is tiled the
                # weight stream repeats once per batch element.
                pl.BlockSpec((nR, TC), lambda b, c: (0, c)),
                pl.BlockSpec((nR, SSp), lambda b, c: (0, 0)),
            ],
            out_specs=pl.BlockSpec((1, nR, SSp), lambda b, c: (b, 0, 0)),
            scratch_shapes=[pltpu.VMEM((nR, SSp), jnp.float32)],
        ),
        compiler_params=pltpu.CompilerParams(
            dimension_semantics=("parallel", "arbitrary"),
            vmem_limit_bytes=vmem_limit,
        ),
    )(x_flat, pallT, w_all, mask)


# ------------------- kernel 2: bilinear upsample (HW-tiled) ----------------- #

def _upsample_kernel(y_ref, uallT_ref, o_ref):
    # y_ref    : (1, nR, SSp)  bf16  all-branch conv outputs
    # uallT_ref: (SSp, THW)    bf16  stacked bilinear-upsample matrices (transposed)
    # o_ref    : (1, nR, THW)  f32   branch outputs, native (channels, HW) layout
    o_ref[0] = jnp.dot(y_ref[0], uallT_ref[...],
                       preferred_element_type=jnp.float32).astype(o_ref.dtype)


def _upsample(y_t, uallT, out_dtype):
    """y_t: (B, nR, SSp) bf16  ->  (B, nR, HWp) out_dtype (all branches)."""
    B, nR, SSp = y_t.shape
    HWp = uallT.shape[1]

    budget = _vmem_budget_bytes()
    THW = _pick_hw_tile(HWp, nR, SSp, int(0.5 * budget))
    n_hw = HWp // THW

    need = (2 * nR * SSp * 2       # y block (bf16)
            + 2 * SSp * THW * 2    # U_all^T slice (bf16)
            + 2 * nR * THW * 4)    # output block (f32)
    vmem_limit = int(min(budget, max(need + (8 << 20), 32 << 20)))

    return pl.pallas_call(
        _upsample_kernel,
        out_shape=jax.ShapeDtypeStruct((B, nR, HWp), out_dtype),
        grid_spec=pltpu.PrefetchScalarGridSpec(
            num_scalar_prefetch=0,
            grid=(B, n_hw),
            in_specs=[
                pl.BlockSpec((1, nR, SSp), lambda b, j: (b, 0, 0)),
                pl.BlockSpec((SSp, THW), lambda b, j: (0, j)),
            ],
            out_specs=pl.BlockSpec((1, nR, THW), lambda b, j: (b, 0, j)),
        ),
        compiler_params=pltpu.CompilerParams(
            dimension_semantics=("parallel", "parallel"),
            vmem_limit_bytes=vmem_limit,
        ),
    )(y_t, uallT)


# ---------------------- linear-map construction (glue) ---------------------- #

def adaptive_pool_matrix(in_size, out_size):
    """Row i averages input indices [floor(i*in/out), ceil((i+1)*in/out))."""
    P = np.zeros((out_size, in_size), dtype=np.float32)
    for i in range(out_size):
        start = (i * in_size) // out_size
        end = -(-((i + 1) * in_size) // out_size)  # ceil
        P[i, start:end] = 1.0 / (end - start)
    return P


def bilinear_upsample_matrix(out_size, in_size):
    """Bilinear interpolation, align_corners=False (modern F.upsample default).
    TODO(synk): legacy (<0.4) F.upsample behaved like align_corners=True."""
    U = np.zeros((out_size, in_size), dtype=np.float32)
    if in_size == 1:
        U[:, 0] = 1.0
        return U
    scale = in_size / out_size
    for h in range(out_size):
        src = (h + 0.5) * scale - 0.5
        src = max(src, 0.0)
        i0 = min(int(np.floor(src)), in_size - 1)
        i1 = min(i0 + 1, in_size - 1)
        frac = src - i0
        U[h, i0] += 1.0 - frac
        U[h, i1] += frac
    return U


def _round_up(n, m):
    return ((n + m - 1) // m) * m


@functools.lru_cache(maxsize=None)
def _pspdec_constants(H, W, setting, reduction_dim):
    """Stacked pooling / upsample matrices (transposed for native-NCHW matmuls)
    and the block-diagonal branch mask.  Built once per (H, W, setting, R)."""
    HW = H * W
    HWp = HW if HW % 128 == 0 else _round_up(HW, 128)   # lane-dense upsample axis
    ss_total = sum(s * s for s in setting)
    SSp = _round_up(max(ss_total, 16), 16)               # bf16 sublane packing
    nR = reduction_dim * len(setting)

    pallT = np.zeros((HW, SSp), np.float32)    # pooling:  x(TC,HW) @ pallT -> (TC,SSp)
    uallT = np.zeros((SSp, HWp), np.float32)   # upsample: y(nR,SSp) @ uallT -> (nR,HWp)
    mask = np.zeros((nR, SSp), np.float32)
    off = 0
    for bi, s in enumerate(setting):
        P = np.kron(adaptive_pool_matrix(H, s), adaptive_pool_matrix(W, s))            # (ss, HW)
        U = np.kron(bilinear_upsample_matrix(H, s), bilinear_upsample_matrix(W, s))    # (HW, ss)
        ss = s * s
        pallT[:, off:off + ss] = P.T
        uallT[off:off + ss, :HW] = U.T
        mask[bi * reduction_dim:(bi + 1) * reduction_dim, off:off + ss] = 1.0
        off += ss
    # Zero padding (extra SSp columns/rows, extra HW columns) is exactly neutral.
    return (jnp.asarray(pallT, jnp.bfloat16),
            jnp.asarray(uallT, jnp.bfloat16),
            jnp.asarray(mask, jnp.float32),
            HWp, SSp)


# ---------------------------------- PSPDec ---------------------------------- #

def psp_dec_forward(x, conv_weights, setting):
    """x: (B, C, H, W) float32; conv_weights: list of (R, C) arrays."""
    B, C, H, W = x.shape
    R = conv_weights[0].shape[0]
    HW = H * W
    pallT, uallT, mask, HWp, _ = _pspdec_constants(H, W, tuple(setting), R)

    # Native NCHW layout: a pure reshape (no transpose / pad / cast HBM pass).
    x_flat = x.reshape(B, C, HW)
    # Concatenated 1x1-conv weights (nB*R, C), bf16 (tiny, one-time).
    w_all = jnp.concatenate(conv_weights, axis=0).astype(jnp.bfloat16)

    y_t = _pool_conv(x_flat, pallT, w_all, mask)            # (B, nB*R, SSp) bf16
    out_t = _upsample(y_t, uallT, x.dtype)                  # (B, nB*R, HWp) f32
    branches = out_t[:, :, :HW].reshape(B, len(setting) * R, H, W)
    return jnp.concatenate([x, branches], axis=1)


# --------------------------- pure-JAX f32 reference -------------------------- #

def psp_dec_reference(x, conv_weights, setting):
    B, C, H, W = x.shape
    xf = x.reshape(B, C, H * W)
    outs = [x]
    for w, s in zip(conv_weights, setting):
        P = np.kron(adaptive_pool_matrix(H, s), adaptive_pool_matrix(W, s))
        U = np.kron(bilinear_upsample_matrix(H, s), bilinear_upsample_matrix(W, s))
        pooled = jnp.einsum('bcn,sn->bcs', xf, jnp.asarray(P))
        y = jnp.maximum(jnp.einsum('rc,bcs->brs', w, pooled), 0.0)
        up = jnp.einsum('ns,brs->brn', jnp.asarray(U), y)
        outs.append(up.reshape(B, w.shape[0], H, W))
    return jnp.concatenate(outs, axis=1)


# ------------------------------------ main ----------------------------------- #

if __name__ == "__main__":
    B, in_dim, H, W = 2, 4, 16, 16
    reduction_dim = 4
    setting = (1, 2, 3)

    key = jax.random.PRNGKey(0)
    kx, *kws = jax.random.split(key, 1 + len(setting))
    x = jax.random.normal(kx, (B, in_dim, H, W), dtype=jnp.float32)
    # Conv2d(in_dim, reduction_dim, kernel_size=1, bias=False) weights
    # (PyTorch shape (R, C, 1, 1) squeezed to (R, C)).
    conv_weights = [
        jax.random.normal(k, (reduction_dim, in_dim), dtype=jnp.float32) * 0.1
        for k in kws
    ]

    out = psp_dec_forward(x, conv_weights, setting)
    out = jax.block_until_ready(out)

    expected_channels = in_dim + reduction_dim * len(setting)
    assert out.shape == (B, expected_channels, H, W), out.shape
    assert bool(jnp.all(jnp.isfinite(out)))
    # original x passes through unchanged as the first concat chunk
    assert bool(jnp.allclose(out[:, :in_dim], x))

    # fused bf16 kernels vs unfused f32 reference
    ref = psp_dec_reference(x, conv_weights, setting)
    assert bool(jnp.allclose(out, ref, rtol=5e-2, atol=1e-2)), \
        float(jnp.max(jnp.abs(out - ref)))

    print("KERNEL_OK")
</pallas_src>

<mosaic_0001>
module attributes {stable_mosaic.version = 11 : i64} {
  func.func @_pool_conv_kernel(%arg0: i32, %arg1: i32, %arg2: memref<1x4x256xf32, #tpu.memory_space<vmem>>, %arg3: memref<256x16xbf16, #tpu.memory_space<vmem>>, %arg4: memref<12x4xbf16, #tpu.memory_space<vmem>>, %arg5: memref<12x16xf32, #tpu.memory_space<vmem>>, %arg6: memref<1x12x16xbf16, #tpu.memory_space<vmem>>, %arg7: memref<12x16xf32, #tpu.memory_space<vmem>>) attributes {dimension_semantics = [#tpu.dimension_semantics<parallel>, #tpu.dimension_semantics<arbitrary>], iteration_bounds = array<i64: 2, 1>, scalar_prefetch = 0 : i64, scratch_operands = 1 : i64, tpu.core_type = #tpu.core_type<tc>, window_params = [{transform_indices = @transform_0, window_bounds = array<i64: 1, 4, 256>}, {pipeline_mode = #tpu.pipeline_mode<synchronous>, transform_indices = @transform_1, window_bounds = array<i64: 256, 16>}, {transform_indices = @transform_2, window_bounds = array<i64: 12, 4>}, {pipeline_mode = #tpu.pipeline_mode<synchronous>, transform_indices = @transform_3, window_bounds = array<i64: 12, 16>}, {transform_indices = @transform_4, window_bounds = array<i64: 1, 12, 16>}]} {
    %c0_i32 = arith.constant 0 : i32
    %0 = arith.cmpi eq, %arg1, %c0_i32 : i32
    %1 = arith.extui %0 : i1 to i32
    %c0_i32_0 = arith.constant 0 : i32
    %2 = arith.cmpi ne, %1, %c0_i32_0 : i32
    scf.if %2 {
      %cst_14 = arith.constant 0.000000e+00 : f32
      %17 = vector.broadcast %cst_14 : f32 to vector<12x16xf32>
      %c0_15 = arith.constant 0 : index
      %c0_16 = arith.constant 0 : index
      %18 = vector.load %arg7[%c0_15, %c0_16] : memref<12x16xf32, #tpu.memory_space<vmem>>, vector<12x16xf32>
      tpu.vector_store %arg7[%c0_15, %c0_16], %17 {strides = array<i32>} : memref<12x16xf32, #tpu.memory_space<vmem>>, vector<12x16xf32>,
    } else {
    }
    %c0 = arith.constant 0 : index
    %c0_1 = arith.constant 0 : index
    %c0_2 = arith.constant 0 : index
    %3 = vector.load %arg2[%c0, %c0_1, %c0_2] : memref<1x4x256xf32, #tpu.memory_space<vmem>>, vector<1x4x256xf32>
    %4 = vector.shape_cast %3 : vector<1x4x256xf32> to vector<4x256xf32>
    %5 = arith.truncf %4 : vector<4x256xf32> to vector<4x256xbf16>
    %c0_3 = arith.constant 0 : index
    %c0_4 = arith.constant 0 : index
    %6 = vector.load %arg3[%c0_3, %c0_4] : memref<256x16xbf16, #tpu.memory_space<vmem>>, vector<256x16xbf16>
    %cst = arith.constant dense<0.000000e+00> : vector<4x16xf32>
    %7 = tpu.matmul %5, %6, %cst {dimension_numbers = #tpu.dot_dimension_numbers<[1], [0], [0], [1], [0, 0, 1, 1], [], []>} : vector<4x256xbf16>, vector<256x16xbf16>, vector<4x16xf32> -> vector<4x16xf32>
    %c0_5 = arith.constant 0 : index
    %c0_6 = arith.constant 0 : index
    %8 = vector.load %arg7[%c0_5, %c0_6] : memref<12x16xf32, #tpu.memory_space<vmem>>, vector<12x16xf32>
    %c0_7 = arith.constant 0 : index
    %c0_8 = arith.constant 0 : index
    %9 = vector.load %arg4[%c0_7, %c0_8] : memref<12x4xbf16, #tpu.memory_space<vmem>>, vector<12x4xbf16>
    %10 = arith.truncf %7 : vector<4x16xf32> to vector<4x16xbf16>
    %cst_9 = arith.constant dense<0.000000e+00> : vector<12x16xf32>
    %11 = tpu.matmul %9, %10, %cst_9 {dimension_numbers = #tpu.dot_dimension_numbers<[1], [0], [0], [1], [0, 0, 1, 1], [], []>} : vector<12x4xbf16>, vector<4x16xbf16>, vector<12x16xf32> -> vector<12x16xf32>
    %12 = arith.addf %8, %11 : vector<12x16xf32>
    %c0_10 = arith.constant 0 : index
    %c0_11 = arith.constant 0 : index
    %13 = vector.load %arg7[%c0_10, %c0_11] : memref<12x16xf32, #tpu.memory_space<vmem>>, vector<12x16xf32>
    tpu.vector_store %arg7[%c0_10, %c0_11], %12 {strides = array<i32>} : memref<12x16xf32, #tpu.memory_space<vmem>>, vector<12x16xf32>,
    %c0_i32_12 = arith.constant 0 : i32
    %14 = arith.cmpi eq, %arg1, %c0_i32_12 : i32
    %15 = arith.extui %14 : i1 to i32
    %c0_i32_13 = arith.constant 0 : i32
    %16 = arith.cmpi ne, %15, %c0_i32_13 : i32
    scf.if %16 {
      %c0_14 = arith.constant 0 : index
      %c0_15 = arith.constant 0 : index
      %17 = vector.load %arg7[%c0_14, %c0_15] : memref<12x16xf32, #tpu.memory_space<vmem>>, vector<12x16xf32>
      %c0_16 = arith.constant 0 : index
      %c0_17 = arith.constant 0 : index
      %18 = vector.load %arg5[%c0_16, %c0_17] : memref<12x16xf32, #tpu.memory_space<vmem>>, vector<12x16xf32>
      %19 = arith.mulf %17, %18 : vector<12x16xf32>
      %cst_18 = arith.constant 0.000000e+00 : f32
      %20 = vector.broadcast %cst_18 : f32 to vector<12x16xf32>
      %21 = arith.maximumf %19, %20 : vector<12x16xf32>
      %22 = arith.truncf %21 : vector<12x16xf32> to vector<12x16xbf16>
      %c0_19 = arith.constant 0 : index
      %c0_20 = arith.constant 0 : index
      %c0_21 = arith.constant 0 : index
      %23 = vector.load %arg6[%c0_19, %c0_20, %c0_21] : memref<1x12x16xbf16, #tpu.memory_space<vmem>>, vector<1x12x16xbf16>
      %24 = vector.shape_cast %23 : vector<1x12x16xbf16> to vector<12x16xbf16>
      %25 = vector.shape_cast %22 : vector<12x16xbf16> to vector<1x12x16xbf16>
      tpu.vector_store %arg6[%c0_19, %c0_20, %c0_21], %25 {strides = array<i32>} : memref<1x12x16xbf16, #tpu.memory_space<vmem>>, vector<1x12x16xbf16>,
    } else {
    }
    return
  }
  func.func @transform_0(%arg0: i32, %arg1: i32) -> (i32, i32, i32) {
    %c0_i32 = arith.constant 0 : i32
    %c0_i32_0 = arith.constant 0 : i32
    return %arg0, %arg1, %c0_i32 : i32, i32, i32
  }
  func.func @transform_1(%arg0: i32, %arg1: i32) -> (i32, i32) {
    %c0_i32 = arith.constant 0 : i32
    %c0_i32_0 = arith.constant 0 : i32
    %c0_i32_1 = arith.constant 0 : i32
    return %c0_i32, %c0_i32_0 : i32, i32
  }
  func.func @transform_2(%arg0: i32, %arg1: i32) -> (i32, i32) {
    %c0_i32 = arith.constant 0 : i32
    %c0_i32_0 = arith.constant 0 : i32
    return %c0_i32, %arg1 : i32, i32
  }
  func.func @transform_3(%arg0: i32, %arg1: i32) -> (i32, i32) {
    %c0_i32 = arith.constant 0 : i32
    %c0_i32_0 = arith.constant 0 : i32
    %c0_i32_1 = arith.constant 0 : i32
    return %c0_i32, %c0_i32_0 : i32, i32
  }
  func.func @transform_4(%arg0: i32, %arg1: i32) -> (i32, i32, i32) {
    %c0_i32 = arith.constant 0 : i32
    %c0_i32_0 = arith.constant 0 : i32
    %c0_i32_1 = arith.constant 0 : i32
    return %arg0, %c0_i32, %c0_i32_0 : i32, i32, i32
  }
}

</mosaic_0001>

<llo_original>
// kernel: tpu_custom_call.1
$region0: #{tpu_custom_call.1}
  #allocation0 [shape = 'u32[]', space=smem, size = 0x4, offset = 0x4, fixed_abs, tag = 'smem constant byte address 0x4 - core index']
  #allocation1 [shape = 'u32[144,128]{1,0:T(1,128)}', space=vmem, size = 0x12000, scoped, tag = 'internal scratch']
  #allocation2 [shape = 'f32[12,16]{1,0:T(8,128)}', space=vmem, size = 0x2000, scoped, tag = 'scratch operand']
  %s0 = inlined_call_operand.vmem [shape: f32[2,4,256], index: 0, kind: input, shape index: {}]
  %s1 = inlined_call_operand.vmem [shape: bf16[256,16], index: 1, kind: input, shape index: {}]
  %s2 = inlined_call_operand.vmem [shape: bf16[12,4], index: 2, kind: input, shape index: {}]
  %s3 = inlined_call_operand.vmem [shape: f32[12,16], index: 3, kind: input, shape index: {}]
  %s4 = inlined_call_operand.vmem [shape: bf16[2,12,16], index: 4, kind: output, shape index: {}]
  %s5 = sld [smem:[#allocation0]]
  $region57: #{tpu_custom_call.1} parent=0
    _
  %s7 = ssub.s32 1, %s5
  %s8 = scalar_select 0, %s7, %s5
  loop: start=0, step=1, limit=4
  $region2: #{tpu_custom_call.1} parent=0 // loop_pre_header
    _
  $region3: #{tpu_custom_call.1} parent=0 // loop_header
    %s10 = sphi 0, %s14
    %p11 = scmp.ge.s32.totalorder %s10, 4
    %s17 = sphi 0, %s29
    %s18 = sphi 0, %s25
    %s19 = sphi 0, %s17
    %s20 = sphi 0, %s18
    %s21 = sphi 0, %s19
    %s22 = sphi 0, %s20
    %s34 = sphi 0, %s36
    %s37 = sphi 0, %s34
    %s38 = sphi 0, %s37
    %s54 = sphi 0, %s38
    %s58 = sphi 0, %s58
    %s60 = sphi 0, %s58
    %s61 = sphi 0, %s60
    %s75 = sphi 0, %s61
    %s81 = sphi 0, %s83
    %s84 = sphi 0, %s81
    %s85 = sphi 0, %s84
    %s101 = sphi 0, %s85
    %s105 = sphi 0, %s105
    %s107 = sphi 0, %s105
    %s108 = sphi 0, %s107
    %s122 = sphi 0, %s108
    %s128 = sphi 0, %s130
    %s131 = sphi 0, %s128
    %s132 = sphi 0, %s131
    %s148 = sphi 0, %s132
  $region4: #{tpu_custom_call.1} parent=0 // loop_header_branch
    %13 = sbr.rel (%p11) target = $region8
  $region5: #{tpu_custom_call.1} parent=0 // loop_body
    %s15 = ssub.s32 %s10, 1
    %s16 = ssub.s32 %s10, 2
    %s23 = sadd.s32 1, %s18
    %p24 = scmp.ge.s32.totalorder %s23, 1
    %s25 = scalar_select %p24, 0, %s23
    %s26 = sadd.s32 1, %s17
    %s27 = scalar_select %p24, %s26, %s17
    %p28 = scmp.ge.s32.totalorder %s27, 2
    %s29 = scalar_select %p28, 0, %s27
    %s30 = ssub.s32 %s17, %s29
    %s31 = ssub.s32 %s18, %s25
    %s32 = sor.u32 %s30, %s31
    %p33 = scmp.eq.s32.totalorder %s32, 0
    %s35 = sadd.s32 %s34, 1
    %s36 = scalar_select %p33, %s34, %s35
    %p39 = pneg %p33
    %p40 = scmp.eq.s32.totalorder %s10, 1
    %p41 = por %p39, %p40
    %p42 = scmp.ne.s32.totalorder %s34, %s37
    %p43 = scmp.eq.s32.totalorder %s10, 0
    %p44 = por %p42, %p43
    %p45 = scmp.ne.s32.totalorder %s34, %s37
    %p46 = scmp.eq.s32.totalorder %s15, 1
    %p47 = por %p45, %p46
    %p48 = scmp.ne.s32.totalorder %s37, %s38
    %p49 = scmp.eq.s32.totalorder %s15, 0
    %p50 = por %p48, %p49
    %p51 = scmp.ne.s32.totalorder %s37, %s38
    %p52 = scmp.eq.s32.totalorder %s16, 1
    %p53 = por %p51, %p52
    %p55 = scmp.ne.s32.totalorder %s38, %s54
    %p56 = scmp.eq.s32.totalorder %s16, 0
    %p57 = por %p55, %p56
    %s59 = sadd.s32 %s58, 1
    %p62 = scmp.eq.s32.totalorder %s10, 1
    %p63 = scmp.ne.s32.totalorder %s58, %s60
    %p64 = scmp.eq.s32.totalorder %s10, 0
    %p65 = por %p63, %p64
    %p66 = scmp.ne.s32.totalorder %s58, %s60
    %p67 = scmp.eq.s32.totalorder %s15, 1
    %p68 = por %p66, %p67
    %p69 = scmp.ne.s32.totalorder %s60, %s61
    %p70 = scmp.eq.s32.totalorder %s15, 0
    %p71 = por %p69, %p70
    %p72 = scmp.ne.s32.totalorder %s60, %s61
    %p73 = scmp.eq.s32.totalorder %s16, 1
    %p74 = por %p72, %p73
    %p76 = scmp.ne.s32.totalorder %s61, %s75
    %p77 = scmp.eq.s32.totalorder %s16, 0
    %p78 = por %p76, %p77
    %s79 = ssub.s32 %s18, %s25
    %p80 = scmp.eq.s32.totalorder %s79, 0
    %s82 = sadd.s32 %s81, 1
    %s83 = scalar_select %p80, %s81, %s82
    %p86 = pneg %p80
    %p87 = scmp.eq.s32.totalorder %s10, 1
    %p88 = por %p86, %p87
    %p89 = scmp.ne.s32.totalorder %s81, %s84
    %p90 = scmp.eq.s32.totalorder %s10, 0
    %p91 = por %p89, %p90
    %p92 = scmp.ne.s32.totalorder %s81, %s84
    %p93 = scmp.eq.s32.totalorder %s15, 1
    %p94 = por %p92, %p93
    %p95 = scmp.ne.s32.totalorder %s84, %s85
    %p96 = scmp.eq.s32.totalorder %s15, 0
    %p97 = por %p95, %p96
    %p98 = scmp.ne.s32.totalorder %s84, %s85
    %p99 = scmp.eq.s32.totalorder %s16, 1
    %p100 = por %p98, %p99
    %p102 = scmp.ne.s32.totalorder %s85, %s101
    %p103 = scmp.eq.s32.totalorder %s16, 0
    %p104 = por %p102, %p103
    %s106 = sadd.s32 %s105, 1
    %p109 = scmp.eq.s32.totalorder %s10, 1
    %p110 = scmp.ne.s32.totalorder %s105, %s107
    %p111 = scmp.eq.s32.totalorder %s10, 0
    %p112 = por %p110, %p111
    %p113 = scmp.ne.s32.totalorder %s105, %s107
    %p114 = scmp.eq.s32.totalorder %s15, 1
    %p115 = por %p113, %p114
    %p116 = scmp.ne.s32.totalorder %s107, %s108
    %p117 = scmp.eq.s32.totalorder %s15, 0
    %p118 = por %p116, %p117
    %p119 = scmp.ne.s32.totalorder %s107, %s108
    %p120 = scmp.eq.s32.totalorder %s16, 1
    %p121 = por %p119, %p120
    %p123 = scmp.ne.s32.totalorder %s108, %s122
    %p124 = scmp.eq.s32.totalorder %s16, 0
    %p125 = por %p123, %p124
    %s126 = ssub.s32 %s17, %s29
    %p127 = scmp.eq.s32.totalorder %s126, 0
    %s129 = sadd.s32 %s128, 1
    %s130 = scalar_select %p127, %s128, %s129
    %p133 = pneg %p127
    %p134 = scmp.eq.s32.totalorder %s10, 1
    %p135 = por %p133, %p134
    %p136 = scmp.ne.s32.totalorder %s128, %s131
    %p137 = scmp.eq.s32.totalorder %s10, 0
    %p138 = por %p136, %p137
    %p139 = scmp.ne.s32.totalorder %s128, %s131
    %p140 = scmp.eq.s32.totalorder %s15, 1
    %p141 = por %p139, %p140
    %p142 = scmp.ne.s32.totalorder %s131, %s132
    %p143 = scmp.eq.s32.totalorder %s15, 0
    %p144 = por %p142, %p143
    %p145 = scmp.ne.s32.totalorder %s131, %s132
    %p146 = scmp.eq.s32.totalorder %s16, 1
    %p147 = por %p145, %p146
    %p149 = scmp.ne.s32.totalorder %s132, %s148
    %p150 = scmp.eq.s32.totalorder %s16, 0
    %p151 = por %p149, %p150
    %p152 = scmp.le.s32.totalorder 1, %s10
    %p153 = scmp.lt.s32.totalorder %s10, 3
    %p154 = pnand %p152, %p153
    %p155 = pneg %p154
    // Predicated region
    $region9: #{tpu_custom_call.1} parent=5 // pred_check
      _
    $region10: #{tpu_custom_call.1} parent=5 // pred_check_branch
      %157 = sbr.rel (%p154) target = $region12
    $region11: #{tpu_custom_call.1} parent=5 // pred_region
      %s158 = ssub.s32 %s10, 1
      // Predicated region
      $region13: #{tpu_custom_call.1} parent=11 // pred_check
        %p159 = pneg %p71
      $region14: #{tpu_custom_call.1} parent=11 // pred_check_branch
        %161 = sbr.rel (%p159) target = $region16
      $region15: #{tpu_custom_call.1} parent=11 // pred_region
        _
      $region16: #{tpu_custom_call.1} parent=11 // pred_fallthru
        _
      // Predicated region
      $region17: #{tpu_custom_call.1} parent=11 // pred_check
        %p162 = pneg %p97
      $region18: #{tpu_custom_call.1} parent=11 // pred_check_branch
        %164 = sbr.rel (%p162) target = $region20
      $region19: #{tpu_custom_call.1} parent=11 // pred_region
        %p165 = scmp.lt.s32.totalorder %s20, 0
        %s166 = scalar_select %p165, %s20, 0
        %s167 = smul.addr %s166, 4
        %s168 = scalar_lea.vmem %s2, %s167
      $region20: #{tpu_custom_call.1} parent=11 // pred_fallthru
        _
      // Predicated region
      $region21: #{tpu_custom_call.1} parent=11 // pred_check
        %p169 = pneg %p118
      $region22: #{tpu_custom_call.1} parent=11 // pred_check_branch
        %171 = sbr.rel (%p169) target = $region24
      $region23: #{tpu_custom_call.1} parent=11 // pred_region
        _
      $region24: #{tpu_custom_call.1} parent=11 // pred_fallthru
        _
    $region12: #{tpu_custom_call.1} parent=5 // pred_fallthru
      _
    %p172 = scmp.lt.s32.totalorder %s10, 2
    // Predicated region
    $region25: #{tpu_custom_call.1} parent=5 // pred_check
      %p173 = pneg %p172
    $region26: #{tpu_custom_call.1} parent=5 // pred_check_branch
      %175 = sbr.rel (%p173) target = $region28
    $region27: #{tpu_custom_call.1} parent=5 // pred_region
      // Predicated region
      $region29: #{tpu_custom_call.1} parent=27 // pred_check
        %p176 = pneg %p44
      $region30: #{tpu_custom_call.1} parent=27 // pred_check_branch
        %178 = sbr.rel (%p176) target = $region32
      $region31: #{tpu_custom_call.1} parent=27 // pred_region
        %p179 = scmp.lt.s32.totalorder %s17, 1
        %s180 = scalar_select %p179, %s17, 1
        %p181 = scmp.lt.s32.totalorder %s18, 0
        %s182 = scalar_select %p181, %s18, 0
        %s183 = smul.addr %s182, 2
        %s184 = smul.addr %s180, 2
        %s185 = sadd.s32 %s183, %s184
        %s186 = smul.addr %s185, 4
        %s187 = scalar_lea.vmem %s0, %s186
      $region32: #{tpu_custom_call.1} parent=27 // pred_fallthru
        _
    $region28: #{tpu_custom_call.1} parent=5 // pred_fallthru
      _
    %p188 = scmp.le.s32.totalorder 1, %s10
    %p189 = scmp.lt.s32.totalorder %s10, 3
    %p190 = pnand %p188, %p189
    %p191 = pneg %p190
    // Predicated region
    $region33: #{tpu_custom_call.1} parent=5 // pred_check
      _
    $region34: #{tpu_custom_call.1} parent=5 // pred_check_branch
      %193 = sbr.rel (%p190) target = $region36
    $region35: #{tpu_custom_call.1} parent=5 // pred_region
      %s194 = ssub.s32 %s10, 1
      %p195 = scmp.lt.s32.totalorder %s19, 1
      %s196 = scalar_select %p195, %s19, 1
      %p197 = scmp.lt.s32.totalorder %s20, 0
      %s198 = scalar_select %p197, %s20, 0
      %s199 = smul.addr %s198, 2
      %s200 = smul.addr %s196, 2
      %s201 = sadd.s32 %s199, %s200
      %s202 = smul.addr %s201, 4
      %s203 = scalar_lea.vmem %s0, %s202
      %p204 = pneg %p50
      %p205 = pneg %p47
      %p206 = pneg %p71
      %p207 = pneg %p68
      %p208 = scmp.lt.s32.totalorder %s20, 0
      %s209 = scalar_select %p208, %s20, 0
      %s210 = smul.addr %s209, 4
      %s211 = scalar_lea.vmem %s2, %s210
      %p212 = pneg %p97
      %p213 = pneg %p94
      %p214 = pneg %p118
      %p215 = pneg %p115
      %p216 = pneg %p144
      %p217 = pneg %p141
      %p218 = scmp.lt.s32.totalorder %s19, 1
      %s219 = scalar_select %p218, %s19, 1
      %s220 = smul.addr %s219, 2
      %s221 = smul.addr %s220, 4
      %s222 = scalar_lea.vmem %s4, %s221
      %p223 = scmp.lt.s32.totalorder %s19, 1
      %s224 = scalar_select %p223, %s19, 1
      %p225 = scmp.lt.s32.totalorder %s20, 0
      %s226 = scalar_select %p225, %s20, 0
      %s227 = smul.addr %s226, 2
      %s228 = smul.addr %s224, 2
      %s229 = sadd.s32 %s227, %s228
      %s230 = smul.addr %s229, 4
      %s231 = scalar_lea.vmem %s0, %s230
      %p232 = scmp.lt.s32.totalorder %s20, 0
      %s233 = scalar_select %p232, %s20, 0
      %s234 = smul.addr %s233, 4
      %s235 = scalar_lea.vmem %s2, %s234
      %p236 = scmp.lt.s32.totalorder %s19, 1
      %s237 = scalar_select %p236, %s19, 1
      %s238 = smul.addr %s237, 2
      %s239 = smul.addr %s238, 4
      %s240 = scalar_lea.vmem %s4, %s239
      %p242 = scmp.eq.s32.totalorder %s20, 0
      // Predicated region
      $region37: #{tpu_custom_call.1} parent=35 // pred_check
        %p243 = pneg %p242
      $region38: #{tpu_custom_call.1} parent=35 // pred_check_branch
        %245 = sbr.rel (%p243) target = $region40
      $region39: #{tpu_custom_call.1} parent=35 // pred_region
        %vm246 = vcmask 130048
        %247 = vst.msk [vmem:[#allocation2] sm:$0xff] %vm246, 0.0
        %vm248 = vcmask 125952
        %249 = vst.msk [vmem:[#allocation2 + $0x8] sm:$0xf] %vm248, 0.0
      $region40: #{tpu_custom_call.1} parent=35 // pred_fallthru
        _
      %v250 = vld [vmem:[%s231] sm:$0xff]
      %v252 = vcombine.high %v250, %v250
      %v254 = vpack.c.bf16 %v250, %v250
      %v255 = vpack.c.bf16 %v252, %v252
      %v256 = vld [vmem:[%s1] sm:$0xf]
      %v257 = vld [vmem:[%s1 + $0x4] sm:$0xf]
      %v258 = vld [vmem:[%s1 + $0x8] sm:$0xf]
      %v259 = vld [vmem:[%s1 + $0xc] sm:$0xf]
      %v260 = vld [vmem:[%s1 + $0x10] sm:$0xf]
      %v261 = vld [vmem:[%s1 + $0x14] sm:$0xf]
      %v262 = vld [vmem:[%s1 + $0x18] sm:$0xf]
      %v263 = vld [vmem:[%s1 + $0x1c] sm:$0xf]
      %v264 = vld [vmem:[%s1 + $0x20] sm:$0xf]
      %v265 = vld [vmem:[%s1 + $0x24] sm:$0xf]
      %v266 = vld [vmem:[%s1 + $0x28] sm:$0xf]
      %v267 = vld [vmem:[%s1 + $0x2c] sm:$0xf]
      %v268 = vld [vmem:[%s1 + $0x30] sm:$0xf]
      %v269 = vld [vmem:[%s1 + $0x34] sm:$0xf]
      %v270 = vld [vmem:[%s1 + $0x38] sm:$0xf]
      %v271 = vld [vmem:[%s1 + $0x3c] sm:$0xf]
      %v272 = vld [vmem:[%s1 + $0x40] sm:$0xf]
      %v273 = vld [vmem:[%s1 + $0x44] sm:$0xf]
      %v274 = vld [vmem:[%s1 + $0x48] sm:$0xf]
      %v275 = vld [vmem:[%s1 + $0x4c] sm:$0xf]
      %v276 = vld [vmem:[%s1 + $0x50] sm:$0xf]
      %v277 = vld [vmem:[%s1 + $0x54] sm:$0xf]
      %v278 = vld [vmem:[%s1 + $0x58] sm:$0xf]
      %v279 = vld [vmem:[%s1 + $0x5c] sm:$0xf]
      %v280 = vld [vmem:[%s1 + $0x60] sm:$0xf]
      %v281 = vld [vmem:[%s1 + $0x64] sm:$0xf]
      %v282 = vld [vmem:[%s1 + $0x68] sm:$0xf]
      %v283 = vld [vmem:[%s1 + $0x6c] sm:$0xf]
      %v284 = vld [vmem:[%s1 + $0x70] sm:$0xf]
      %v285 = vld [vmem:[%s1 + $0x74] sm:$0xf]
      %v286 = vld [vmem:[%s1 + $0x78] sm:$0xf]
      %v287 = vld [vmem:[%s1 + $0x7c] sm:$0xf]
      %v320 = vunpack.c.l.b16 %v256
      %v321 = vunpack.c.l.b16 %v257
      %v322 = vunpack.c.l.b16 %v258
      %v323 = vunpack.c.l.b16 %v259
      %v324 = vunpack.c.l.b16 %v260
      %v325 = vunpack.c.l.b16 %v261
      %v326 = vunpack.c.l.b16 %v262
      %v327 = vunpack.c.l.b16 %v263
      %v328 = vunpack.c.l.b16 %v264
      %v329 = vunpack.c.l.b16 %v265
      %v330 = vunpack.c.l.b16 %v266
      %v331 = vunpack.c.l.b16 %v267
      %v332 = vunpack.c.l.b16 %v268
      %v333 = vunpack.c.l.b16 %v269
      %v334 = vunpack.c.l.b16 %v270
      %v335 = vunpack.c.l.b16 %v271
      %v336 = vunpack.c.l.b16 %v272
      %v337 = vunpack.c.l.b16 %v273
      %v338 = vunpack.c.l.b16 %v274
      %v339 = vunpack.c.l.b16 %v275
      %v340 = vunpack.c.l.b16 %v276
      %v341 = vunpack.c.l.b16 %v277
      %v342 = vunpack.c.l.b16 %v278
      %v343 = vunpack.c.l.b16 %v279
      %v344 = vunpack.c.l.b16 %v280
      %v345 = vunpack.c.l.b16 %v281
      %v346 = vunpack.c.l.b16 %v282
      %v347 = vunpack.c.l.b16 %v283
      %v348 = vunpack.c.l.b16 %v284
      %v349 = vunpack.c.l.b16 %v285
      %v350 = vunpack.c.l.b16 %v286
      %v351 = vunpack.c.l.b16 %v287
      %v352 = vpack.c.b16 %v321, %v320
      %v353 = vpack.c.b16 %v323, %v322
      %v354 = vpack.c.b16 %v325, %v324
      %v355 = vpack.c.b16 %v327, %v326
      %v356 = vpack.c.b16 %v329, %v328
      %v357 = vpack.c.b16 %v331, %v330
      %v358 = vpack.c.b16 %v333, %v332
      %v359 = vpack.c.b16 %v335, %v334
      %v360 = vpack.c.b16 %v337, %v336
      %v361 = vpack.c.b16 %v339, %v338
      %v362 = vpack.c.b16 %v341, %v340
      %v363 = vpack.c.b16 %v343, %v342
      %v364 = vpack.c.b16 %v345, %v344
      %v365 = vpack.c.b16 %v347, %v346
      %v366 = vpack.c.b16 %v349, %v348
      %v367 = vpack.c.b16 %v351, %v350
      %384 = vmatprep.subr.bf16.mxu0 0
      %385 = vmatpush1.bf16.msra.mxu0 %v359
      %386 = vmatprep.subr.bf16.mxu0 0
      %387 = vmatpush1.bf16.msra.mxu0 %v358
      %388 = vmatprep.subr.bf16.mxu0 0
      %389 = vmatpush1.bf16.msra.mxu0 %v357
      %390 = vmatprep.subr.bf16.mxu0 0
      %391 = vmatpush1.bf16.msra.mxu0 %v356
      %392 = vmatprep.subr.bf16.mxu0 0
      %393 = vmatpush1.bf16.msra.mxu0 %v355
      %394 = vmatprep.subr.bf16.mxu0 0
      %395 = vmatpush1.bf16.msra.mxu0 %v354
      %396 = vmatprep.subr.bf16.mxu0 0
      %397 = vmatpush1.bf16.msra.mxu0 %v353
      %398 = vmatprep.subr.bf16.mxu0 0
      %399 = vmatpush1.bf16.msra.mxu0 %v352
      %400 = vmatprep.subr.bf16.mxu0 0
      %401 = vmatpush2.bf16.msra.mxu0 %v367
      %402 = vmatprep.subr.bf16.mxu0 0
      %403 = vmatpush2.bf16.msra.mxu0 %v366
      %404 = vmatprep.subr.bf16.mxu0 0
      %405 = vmatpush2.bf16.msra.mxu0 %v365
      %406 = vmatprep.subr.bf16.mxu0 0
      %407 = vmatpush2.bf16.msra.mxu0 %v364
      %408 = vmatprep.subr.bf16.mxu0 0
      %409 = vmatpush2.bf16.msra.mxu0 %v363
      %410 = vmatprep.subr.bf16.mxu0 0
      %411 = vmatpush2.bf16.msra.mxu0 %v362
      %412 = vmatprep.subr.bf16.mxu0 0
      %413 = vmatpush2.bf16.msra.mxu0 %v361
      %414 = vmatprep.subr.bf16.mxu0 0
      %415 = vmatpush2.bf16.msra.mxu0 %v360
      %416 = vmatprep.mubr.bf16.mxu0 %v255
      %417 = vmatmul.mubr.bf16.gmra.mxu0 %v254
      %v418 = vpop.f32.mrf.mxu0
      %v419 = vadd.f32 0.0, %v418
      %v420 = vpop.f32.mrf.mxu0
      %v421 = vpop.f32.mrf.mxu0
      %v422 = vpop.f32.mrf.mxu0
      %423 = vdwg.mxu0
      %v424 = vld [vmem:[#allocation2] sm:$0xff]
      %v425 = vld [vmem:[#allocation2 + $0x8] sm:$0xf]
      %v426 = vld [vmem:[%s235] sm:$0xf]
      %v427 = vld [vmem:[%s235 + $0x4] sm:$0x3]
      %v428 = vpack.c.bf16 %v419, %v419
      %v431 = vunpack.c.l.b16 %v426
      %v432 = vunpack.c.l.b16 %v427
      %v433 = vpack.c.b16 %v432, %v431
      %vm434 = vcmask 31744
      %v436 = vsel %vm434, %v433, 0
      %vm438 = vcmask 1041408
      %v440 = vsel %vm438, %v428, 0
      %442 = vmatprep.subr.bf16.mxu0 0
      %443 = vmatpush1.bf16.msra.mxu0 0
      %444 = vmatprep.subr.bf16.mxu0 0
      %445 = vmatpush1.bf16.msra.mxu0 0
      %446 = vmatprep.subr.bf16.mxu0 0
      %447 = vmatpush1.bf16.msra.mxu0 0
      %448 = vmatprep.subr.bf16.mxu0 0
      %449 = vmatpush1.bf16.msra.mxu0 0
      %450 = vmatprep.subr.bf16.mxu0 0
      %451 = vmatpush1.bf16.msra.mxu0 0
      %452 = vmatprep.subr.bf16.mxu0 0
      %453 = vmatpush1.bf16.msra.mxu0 0
      %454 = vmatprep.subr.bf16.mxu0 0
      %455 = vmatpush1.bf16.msra.mxu0 0
      %456 = vmatprep.subr.bf16.mxu0 0
      %457 = vmatpush1.bf16.msra.mxu0 %v440
      %458 = vmatprep.subr.bf16.mxu0 0
      %459 = vmatpush2.bf16.msra.mxu0 0
      %460 = vmatprep.subr.bf16.mxu0 0
      %461 = vmatpush2.bf16.msra.mxu0 0
      %462 = vmatprep.subr.bf16.mxu0 0
      %463 = vmatpush2.bf16.msra.mxu0 0
      %464 = vmatprep.subr.bf16.mxu0 0
      %465 = vmatpush2.bf16.msra.mxu0 0
      %466 = vmatprep.subr.bf16.mxu0 0
      %467 = vmatpush2.bf16.msra.mxu0 0
      %468 = vmatprep.subr.bf16.mxu0 0
      %469 = vmatpush2.bf16.msra.mxu0 0
      %470 = vmatprep.subr.bf16.mxu0 0
      %471 = vmatpush2.bf16.msra.mxu0 0
      %472 = vmatprep.subr.bf16.mxu0 0
      %473 = vmatpush2.bf16.msra.mxu0 0
      %474 = vmatprep.mubr.bf16.mxu0 0
      %475 = vmatmul.mubr.bf16.gmra.mxu0 %v436
      %v476 = vpop.f32.mrf.mxu0
      %v477 = vadd.f32 0.0, %v476
      %v478 = vpop.f32.mrf.mxu0
      %v479 = vpop.f32.mrf.mxu0
      %v480 = vadd.f32 0.0, %v479
      %v481 = vpop.f32.mrf.mxu0
      %482 = vdwg.mxu0
      %v483 = vadd.f32 %v424, %v477
      %v484 = vadd.f32 %v425, %v480
      %vm485 = vcmask 130048
      %486 = vst.msk [vmem:[#allocation2] sm:$0xff] %vm485, %v483
      %vm487 = vcmask 125952
      %488 = vst.msk [vmem:[#allocation2 + $0x8] sm:$0xf] %vm487, %v484
      // Predicated region
      $region41: #{tpu_custom_call.1} parent=35 // pred_check
        %p489 = pneg %p242
      $region42: #{tpu_custom_call.1} parent=35 // pred_check_branch
        %491 = sbr.rel (%p489) target = $region44
      $region43: #{tpu_custom_call.1} parent=35 // pred_region
        %v492 = vld [vmem:[#allocation2] sm:$0xff]
        %v493 = vld [vmem:[#allocation2 + $0x8] sm:$0xf]
        %v494 = vld [vmem:[%s3] sm:$0xff]
        %v495 = vld [vmem:[%s3 + $0x8] sm:$0xf]
        %v496 = vmul.f32 %v492, %v494
        %v497 = vmul.f32 %v493, %v495
        %v498 = vmax.f32 %v496, 0.0
        %v499 = vmax.f32 %v497, 0.0
        %v500 = vpack.c.bf16 %v499, %v498
        %v502 = vunpack.c.l.b16 %v500
        %v503 = vunpack.c.h.b16 %v500
        %v504 = vpack.c.b16 %v502, %v502
        %v505 = vpack.c.b16 %v503, %v503
        %508 = vst.msk [vmem:[%s240] sm:$0xf] %vm487, %v504
        %vm509 = vcmask 123904
        %510 = vst.msk [vmem:[%s240 + $0x4] sm:$0x3] %vm509, %v505
      $region44: #{tpu_custom_call.1} parent=35 // pred_fallthru
        _
      %p511 = scmp.lt.s32.totalorder %s19, 1
      %s512 = scalar_select %p511, %s19, 1
      %s513 = smul.addr %s512, 2
      %s514 = smul.addr %s513, 4
      %s515 = scalar_lea.vmem %s4, %s514
      // Predicated region
      $region45: #{tpu_custom_call.1} parent=35 // pred_check
        %p516 = pneg %p141
      $region46: #{tpu_custom_call.1} parent=35 // pred_check_branch
        %518 = sbr.rel (%p516) target = $region48
      $region47: #{tpu_custom_call.1} parent=35 // pred_region
        _
      $region48: #{tpu_custom_call.1} parent=35 // pred_fallthru
        _
    $region36: #{tpu_custom_call.1} parent=5 // pred_fallthru
      _
    %p519 = scmp.le.s32.totalorder 2, %s10
    // Predicated region
    $region49: #{tpu_custom_call.1} parent=5 // pred_check
      %p520 = pneg %p519
    $region50: #{tpu_custom_call.1} parent=5 // pred_check_branch
      %522 = sbr.rel (%p520) target = $region52
    $region51: #{tpu_custom_call.1} parent=5 // pred_region
      %s523 = ssub.s32 %s10, 2
      // Predicated region
      $region53: #{tpu_custom_call.1} parent=51 // pred_check
        %p524 = pneg %p147
      $region54: #{tpu_custom_call.1} parent=51 // pred_check_branch
        %526 = sbr.rel (%p524) target = $region56
      $region55: #{tpu_custom_call.1} parent=51 // pred_region
        %p527 = scmp.lt.s32.totalorder %s21, 1
        %s528 = scalar_select %p527, %s21, 1
        %s529 = smul.addr %s528, 2
        %s530 = smul.addr %s529, 4
        %s531 = scalar_lea.vmem %s4, %s530
      $region56: #{tpu_custom_call.1} parent=51 // pred_fallthru
        _
    $region52: #{tpu_custom_call.1} parent=5 // pred_fallthru
      _
  $region6: #{tpu_custom_call.1} parent=0 // loop_footer
    %s14 = sadd.s32 1, %s10
  $region7: #{tpu_custom_call.1} parent=0 // loop_footer_branch
    %9 = sbr.rel target = $region3
  $region8: #{tpu_custom_call.1} parent=0 // loop_exit
    _

</llo_original>
